<compile_context>
chip_gen: v6e
topology: v6e:2x2x1
jax: 0.10.0
libtpu: 0.0.40
codegen_flags: <defaults>
</compile_context>

<pallas_src>
import jax
import jax.numpy as jnp
from jax.experimental import pallas as pl
from jax.experimental.pallas import tpu as pltpu


def attention_layer_kernel(x_ref, w_attn_ref, b_attn_ref, w_ctx_ref, o_ref):
    # x_ref:      (Bb, T, D)   block of batch rows
    # w_attn_ref: (D, A)
    # b_attn_ref: (1, A)
    # w_ctx_ref:  (1, A)       lane-major context vector
    # o_ref:      (Bb, D)
    Bb, T, D = x_ref.shape
    A = w_attn_ref.shape[1]

    x = x_ref[...]                                   # native dtype (f32 or bf16)

    # ---- first Linear + tanh on the MXU: M = Bb*T, K = D, N = A ----------
    x_flat = x.reshape(Bb * T, D)
    h_flat = jnp.tanh(
        jnp.dot(x_flat, w_attn_ref[...], preferred_element_type=jnp.float32)
        + b_attn_ref[...].astype(jnp.float32)
    )                                                # (Bb*T, A), f32 math (v5e-safe)
    h = h_flat.reshape(Bb, T, A)                     # leading-dim split only

    # ---- context scores, lane-major: (Bb,1,A) x (Bb,T,A) -> (Bb,1,T) -----
    w_b = jnp.broadcast_to(
        w_ctx_ref[...].astype(jnp.float32)[None], (Bb, 1, A))
    s = jnp.einsum('bqa,bta->bqt', w_b, h,
                   preferred_element_type=jnp.float32)   # (Bb, 1, T), time in lanes

    # ---- softmax over T (lane axis); denominator folded into epilogue ----
    m = jnp.max(s, axis=-1, keepdims=True)           # (Bb, 1, 1)
    e = jnp.exp(s - m)                               # (Bb, 1, T)
    denom = jnp.sum(e, axis=-1, keepdims=True)       # (Bb, 1, 1)

    # ---- weighted sum over T on the MXU: (Bb,1,T) x (Bb,T,D) -> (Bb,1,D) -
    un = jnp.einsum('bqt,btd->bqd', e.astype(x.dtype), x,
                    preferred_element_type=jnp.float32)
    out = un * pl.reciprocal(denom, approx=True)     # normalize once (EUP)
    o_ref[...] = out.reshape(Bb, D).astype(o_ref.dtype)


def attention_layer(lstm_output, w_attn, b_attn, w_ctx, block_b=None):
    """lstm_output: (B, T, D); w_attn: (D, A); b_attn: (A,); w_ctx: (A,) -> (B, D)."""
    B, T, D = lstm_output.shape
    A = w_attn.shape[1]
    itemsize = jnp.dtype(lstm_output.dtype).itemsize

    if block_b is None:
        if B <= 8:
            # One grid step, block shapes equal full array dims (no padding,
            # no sub-8 sublane tiles on the output store).
            block_b = B
        else:
            # ~256 MXU rows per grid step; keep the double-buffered input block
            # around 8 MiB so it stays well inside scoped VMEM (conservative for
            # v7x's 64 MiB VMEM).
            cap = max(1, (8 * 1024 * 1024) // (2 * T * D * itemsize))
            block_b = max(1, min(pl.cdiv(256, T), cap, B))
            if block_b >= 8:
                block_b = (block_b // 8) * 8          # sublane-aligned row blocks
    # TODO(synk): for very large T, tile over T inside the kernel (two-pass or
    # online softmax) instead of holding the full (block_b, T, D) slab in VMEM.

    grid_b = pl.cdiv(B, block_b)
    b_pad = grid_b * block_b
    x = lstm_output
    if b_pad != B:
        # Zero padding is benign: padded rows produce finite softmax and zero output.
        x = jnp.pad(x, ((0, b_pad - B), (0, 0), (0, 0)))

    b_attn2 = b_attn.reshape(1, A)
    w_ctx2 = w_ctx.reshape(1, A)

    out = pl.pallas_call(
        attention_layer_kernel,
        out_shape=jax.ShapeDtypeStruct((b_pad, D), lstm_output.dtype),
        grid_spec=pltpu.PrefetchScalarGridSpec(
            num_scalar_prefetch=0,
            grid=(grid_b,),
            in_specs=[
                pl.BlockSpec((block_b, T, D), lambda b: (b, 0, 0)),
                pl.BlockSpec((D, A), lambda b: (0, 0)),   # weights stay VMEM-resident
                pl.BlockSpec((1, A), lambda b: (0, 0)),
                pl.BlockSpec((1, A), lambda b: (0, 0)),
            ],
            out_specs=pl.BlockSpec((block_b, D), lambda b: (b, 0)),
        ),
        compiler_params=pltpu.CompilerParams(
            dimension_semantics=("parallel",),
            vmem_limit_bytes=32 * 1024 * 1024,
        ),
    )(x, w_attn, b_attn2, w_ctx2)
    return out[:B]


def attention_layer_ref(lstm_output, w_attn, b_attn, w_ctx):
    # Pure-JAX reference mirroring the PyTorch forward.
    h = jnp.tanh(jnp.einsum("btd,da->bta", lstm_output, w_attn) + b_attn)
    scores = jnp.einsum("bta,a->bt", h, w_ctx)
    p = jax.nn.softmax(scores, axis=1)
    return jnp.einsum("bt,btd->bd", p, lstm_output)


if __name__ == "__main__":
    B, T, D, A = 2, 8, 32, 16   # batch, seq, input_dim, attention_units

    key = jax.random.PRNGKey(0)
    k_x, k_w1, k_b1, k_w2 = jax.random.split(key, 4)

    lstm_output = jax.random.normal(k_x, (B, T, D), dtype=jnp.float32)
    # Parameters with nn.Linear(D, A) / nn.Linear(A, 1, bias=False) shapes,
    # stored pre-transposed for x @ W.
    w_attn = jax.random.normal(k_w1, (D, A), dtype=jnp.float32) * 0.1
    b_attn = jax.random.normal(k_b1, (A,), dtype=jnp.float32) * 0.1
    w_ctx = jax.random.normal(k_w2, (A,), dtype=jnp.float32) * 0.1

    out = attention_layer(lstm_output, w_attn, b_attn, w_ctx)
    jax.block_until_ready(out)

    ref = attention_layer_ref(lstm_output, w_attn, b_attn, w_ctx)
    assert out.shape == (B, D)
    # Tolerance slightly loosened because the kernel uses the EUP approximate
    # reciprocal for the softmax denominator.
    assert jnp.allclose(out, ref, atol=2e-3, rtol=2e-3), float(
        jnp.max(jnp.abs(out - ref)))

    print("KERNEL_OK")
</pallas_src>

<mosaic_0001>
module attributes {stable_mosaic.version = 11 : i64} {
  func.func @attention_layer_kernel(%arg0: i32, %arg1: memref<2x8x32xf32, #tpu.memory_space<vmem>>, %arg2: memref<32x16xf32, #tpu.memory_space<vmem>>, %arg3: memref<1x16xf32, #tpu.memory_space<vmem>>, %arg4: memref<1x16xf32, #tpu.memory_space<vmem>>, %arg5: memref<2x32xf32, #tpu.memory_space<vmem>>) attributes {dimension_semantics = [#tpu.dimension_semantics<parallel>], iteration_bounds = array<i64: 1>, scalar_prefetch = 0 : i64, scratch_operands = 0 : i64, tpu.core_type = #tpu.core_type<tc>, window_params = [{transform_indices = @transform_0, window_bounds = array<i64: 2, 8, 32>}, {pipeline_mode = #tpu.pipeline_mode<synchronous>, transform_indices = @transform_1, window_bounds = array<i64: 32, 16>}, {pipeline_mode = #tpu.pipeline_mode<synchronous>, transform_indices = @transform_2, window_bounds = array<i64: 1, 16>}, {pipeline_mode = #tpu.pipeline_mode<synchronous>, transform_indices = @transform_3, window_bounds = array<i64: 1, 16>}, {transform_indices = @transform_4, window_bounds = array<i64: 2, 32>}]} {
    %c0 = arith.constant 0 : index
    %c0_0 = arith.constant 0 : index
    %c0_1 = arith.constant 0 : index
    %0 = vector.load %arg1[%c0, %c0_0, %c0_1] : memref<2x8x32xf32, #tpu.memory_space<vmem>>, vector<2x8x32xf32>
    %1 = vector.shape_cast %0 : vector<2x8x32xf32> to vector<16x32xf32>
    %c0_2 = arith.constant 0 : index
    %c0_3 = arith.constant 0 : index
    %2 = vector.load %arg2[%c0_2, %c0_3] : memref<32x16xf32, #tpu.memory_space<vmem>>, vector<32x16xf32>
    %cst = arith.constant dense<0.000000e+00> : vector<16x16xf32>
    %3 = tpu.matmul %1, %2, %cst {dimension_numbers = #tpu.dot_dimension_numbers<[1], [0], [0], [1], [0, 0, 1, 1], [], []>} : vector<16x32xf32>, vector<32x16xf32>, vector<16x16xf32> -> vector<16x16xf32>
    %c0_4 = arith.constant 0 : index
    %c0_5 = arith.constant 0 : index
    %4 = vector.load %arg3[%c0_4, %c0_5] : memref<1x16xf32, #tpu.memory_space<vmem>>, vector<1x16xf32>
    %5 = vector.broadcast %4 : vector<1x16xf32> to vector<16x16xf32>
    %6 = arith.addf %3, %5 : vector<16x16xf32>
    %7 = math.tanh %6 : vector<16x16xf32>
    %8 = vector.shape_cast %7 : vector<16x16xf32> to vector<2x8x16xf32>
    %c0_6 = arith.constant 0 : index
    %c0_7 = arith.constant 0 : index
    %9 = vector.load %arg4[%c0_6, %c0_7] : memref<1x16xf32, #tpu.memory_space<vmem>>, vector<1x16xf32>
    %10 = vector.shape_cast %9 : vector<1x16xf32> to vector<1x1x16xf32>
    %11 = vector.shape_cast %10 : vector<1x1x16xf32> to vector<1x1x16xf32>
    %12 = vector.broadcast %11 : vector<1x1x16xf32> to vector<2x1x16xf32>
    "tpu.trace_start"() <{level = 10 : i32, message = "bqa,bta->bqt"}> : () -> ()
    %cst_8 = arith.constant dense<0.000000e+00> : vector<2x1x8xf32>
    %13 = tpu.matmul %12, %8, %cst_8 {dimension_numbers = #tpu.dot_dimension_numbers<[2], [2], [1], [1], [0, 0, 0, 1, 1, 1], [0], [0]>} : vector<2x1x16xf32>, vector<2x8x16xf32>, vector<2x1x8xf32> -> vector<2x1x8xf32>
    "tpu.trace_stop"() : () -> ()
    %cst_9 = arith.constant dense<0xFF800000> : vector<2x1xf32>
    %14 = vector.multi_reduction <maximumf>, %13, %cst_9 [2] : vector<2x1x8xf32> to vector<2x1xf32>
    %15 = vector.shape_cast %14 : vector<2x1xf32> to vector<2x1x1xf32>
    %16 = vector.broadcast %15 : vector<2x1x1xf32> to vector<2x1x8xf32>
    %17 = arith.subf %13, %16 : vector<2x1x8xf32>
    %18 = math.exp %17 : vector<2x1x8xf32>
    %cst_10 = arith.constant dense<0.000000e+00> : vector<2x1xf32>
    %19 = vector.multi_reduction <add>, %18, %cst_10 [2] : vector<2x1x8xf32> to vector<2x1xf32>
    %20 = vector.shape_cast %19 : vector<2x1xf32> to vector<2x1x1xf32>
    "tpu.trace_start"() <{level = 10 : i32, message = "bqt,btd->bqd"}> : () -> ()
    %cst_11 = arith.constant dense<0.000000e+00> : vector<2x1x32xf32>
    %21 = tpu.matmul %18, %0, %cst_11 {dimension_numbers = #tpu.dot_dimension_numbers<[2], [1], [1], [2], [0, 0, 0, 1, 1, 2], [0], [0]>} : vector<2x1x8xf32>, vector<2x8x32xf32>, vector<2x1x32xf32> -> vector<2x1x32xf32>
    "tpu.trace_stop"() : () -> ()
    %22 = tpu.reciprocal %20 {approx = true} : vector<2x1x1xf32> -> vector<2x1x1xf32>
    %23 = vector.broadcast %22 : vector<2x1x1xf32> to vector<2x1x32xf32>
    %24 = arith.mulf %21, %23 : vector<2x1x32xf32>
    %25 = vector.shape_cast %24 : vector<2x1x32xf32> to vector<2x32xf32>
    %c0_12 = arith.constant 0 : index
    %c0_13 = arith.constant 0 : index
    %26 = vector.load %arg5[%c0_12, %c0_13] : memref<2x32xf32, #tpu.memory_space<vmem>>, vector<2x32xf32>
    tpu.vector_store %arg5[%c0_12, %c0_13], %25 {strides = array<i32>} : memref<2x32xf32, #tpu.memory_space<vmem>>, vector<2x32xf32>,
    return
  }
  func.func @transform_0(%arg0: i32) -> (i32, i32, i32) {
    %c0_i32 = arith.constant 0 : i32
    %c0_i32_0 = arith.constant 0 : i32
    %c0_i32_1 = arith.constant 0 : i32
    return %arg0, %c0_i32, %c0_i32_0 : i32, i32, i32
  }
  func.func @transform_1(%arg0: i32) -> (i32, i32) {
    %c0_i32 = arith.constant 0 : i32
    %c0_i32_0 = arith.constant 0 : i32
    %c0_i32_1 = arith.constant 0 : i32
    return %c0_i32, %c0_i32_0 : i32, i32
  }
  func.func @transform_2(%arg0: i32) -> (i32, i32) {
    %c0_i32 = arith.constant 0 : i32
    %c0_i32_0 = arith.constant 0 : i32
    %c0_i32_1 = arith.constant 0 : i32
    return %c0_i32, %c0_i32_0 : i32, i32
  }
  func.func @transform_3(%arg0: i32) -> (i32, i32) {
    %c0_i32 = arith.constant 0 : i32
    %c0_i32_0 = arith.constant 0 : i32
    %c0_i32_1 = arith.constant 0 : i32
    return %c0_i32, %c0_i32_0 : i32, i32
  }
  func.func @transform_4(%arg0: i32) -> (i32, i32) {
    %c0_i32 = arith.constant 0 : i32
    %c0_i32_0 = arith.constant 0 : i32
    return %arg0, %c0_i32 : i32, i32
  }
}

</mosaic_0001>

<llo_original>
// kernel: tpu_custom_call.1
$region0: #{tpu_custom_call.1}
  #allocation0 [shape = 'u32[]', space=smem, size = 0x4, offset = 0x4, fixed_abs, tag = 'smem constant byte address 0x4 - core index']
  #allocation1 [shape = 'u32[144,128]{1,0:T(1,128)}', space=vmem, size = 0x12000, scoped, tag = 'internal scratch']
  %s0 = inlined_call_operand.vmem [shape: f32[2,8,32], index: 0, kind: input, shape index: {}]
  %s1 = inlined_call_operand.vmem [shape: f32[32,16], index: 1, kind: input, shape index: {}]
  %s2 = inlined_call_operand.vmem [shape: f32[1,16], index: 2, kind: input, shape index: {}]
  %s3 = inlined_call_operand.vmem [shape: f32[1,16], index: 3, kind: input, shape index: {}]
  %s4 = inlined_call_operand.hbm [shape: f32[2,32], index: 4, kind: output, shape index: {}]
  %s5 = sld [smem:[#allocation0]]
  $region26: #{tpu_custom_call.1} parent=0
    _
  %s7 = ssub.s32 1, %s5
  %s8 = scalar_select 0, %s7, %s5
  $region1: #{tpu_custom_call.1} parent=0
    #allocation2 [shape = 'u8[1024]{0}', space=vmem, size = 0x400, scoped, tag = 'output window, operand 0, single buffered']
    #allocation3 [shape = 's32[1]{0}', space=sflag, size = 0x4, scoped, tag = 'scoped memory for tpu_custom_call.1']
    %9 = vsyncpa [#allocation3], 0
    // Predicated region
    $region2: #{tpu_custom_call.1} parent=1 // pred_check
      _
    $region3: #{tpu_custom_call.1} parent=1 // pred_check_branch
      %11 = sbr.rel (0) target = $region5
    $region4: #{tpu_custom_call.1} parent=1 // pred_region
      _
    $region5: #{tpu_custom_call.1} parent=1 // pred_fallthru
      _
    // Predicated region
    $region6: #{tpu_custom_call.1} parent=1 // pred_check
      _
    $region7: #{tpu_custom_call.1} parent=1 // pred_check_branch
      %13 = sbr.rel (0) target = $region9
    $region8: #{tpu_custom_call.1} parent=1 // pred_region
      _
    $region9: #{tpu_custom_call.1} parent=1 // pred_fallthru
      _
    // Predicated region
    $region10: #{tpu_custom_call.1} parent=1 // pred_check
      _
    $region11: #{tpu_custom_call.1} parent=1 // pred_check_branch
      %15 = sbr.rel (0) target = $region13
    $region12: #{tpu_custom_call.1} parent=1 // pred_region
      _
    $region13: #{tpu_custom_call.1} parent=1 // pred_fallthru
      _
    // Predicated region
    $region14: #{tpu_custom_call.1} parent=1 // pred_check
      _
    $region15: #{tpu_custom_call.1} parent=1 // pred_check_branch
      %17 = sbr.rel (0) target = $region17
    $region16: #{tpu_custom_call.1} parent=1 // pred_region
      _
    $region17: #{tpu_custom_call.1} parent=1 // pred_fallthru
      _
    %v18 = vld [vmem:[%s0] sm:$0xff]
    %v19 = vld [vmem:[%s0 + $0x8] sm:$0xff]
    %v20 = vld [vmem:[%s1] sm:$0xff]
    %v21 = vld [vmem:[%s1 + $0x8] sm:$0xff]
    %v22 = vld [vmem:[%s1 + $0x10] sm:$0xff]
    %v23 = vld [vmem:[%s1 + $0x18] sm:$0xff]
    %v24 = vld [vmem:[%s2] sm:$0x1]
    %v26 = vlaneseq
    %v27 = vshrl.u32 %v26, 7
    %v28 = vsub.s32 0, %v27
    %v29 = vrot.slane %v24, %v28
    %vm31 = vcmask 261120
    %v33 = vsel %vm31, %v18, 0
    %v36 = vsel %vm31, %v19, 0
    %38 = vmatprep.subr.mxu0 0.0
    %39 = vmatpush1.msra.mxu0 0.0
    %40 = vmatprep.subr.mxu0 0.0
    %41 = vmatpush1.msra.mxu0 0.0
    %42 = vmatprep.subr.mxu0 0.0
    %43 = vmatpush1.msra.mxu0 0.0
    %44 = vmatprep.subr.mxu0 0.0
    %45 = vmatpush1.msra.mxu0 0.0
    %46 = vmatprep.subr.mxu0 0.0
    %47 = vmatpush1.msra.mxu0 0.0
    %48 = vmatprep.subr.mxu0 0.0
    %49 = vmatpush1.msra.mxu0 0.0
    %50 = vmatprep.subr.mxu0 0.0
    %51 = vmatpush1.msra.mxu0 0.0
    %52 = vmatprep.subr.mxu0 0.0
    %53 = vmatpush1.msra.mxu0 0.0
    %54 = vmatprep.subr.mxu0 0.0
    %55 = vmatpush1.msra.mxu0 0.0
    %56 = vmatprep.subr.mxu0 0.0
    %57 = vmatpush1.msra.mxu0 0.0
    %58 = vmatprep.subr.mxu0 0.0
    %59 = vmatpush1.msra.mxu0 0.0
    %60 = vmatprep.subr.mxu0 0.0
    %61 = vmatpush1.msra.mxu0 0.0
    %62 = vmatprep.subr.mxu0 0.0
    %63 = vmatpush1.msra.mxu0 %v23
    %64 = vmatprep.subr.mxu0 0.0
    %65 = vmatpush1.msra.mxu0 %v22
    %66 = vmatprep.subr.mxu0 0.0
    %67 = vmatpush1.msra.mxu0 %v21
    %68 = vmatprep.subr.mxu0 0.0
    %69 = vmatpush1.msra.mxu0 %v20
    %70 = vmatprep.subr.mxu0 0.0
    %71 = vmatpush2.msra.mxu0 0.0
    %72 = vmatprep.subr.mxu0 0.0
    %73 = vmatpush2.msra.mxu0 0.0
    %74 = vmatprep.subr.mxu0 0.0
    %75 = vmatpush2.msra.mxu0 0.0
    %76 = vmatprep.subr.mxu0 0.0
    %77 = vmatpush2.msra.mxu0 0.0
    %78 = vmatprep.subr.mxu0 0.0
    %79 = vmatpush2.msra.mxu0 0.0
    %80 = vmatprep.subr.mxu0 0.0
    %81 = vmatpush2.msra.mxu0 0.0
    %82 = vmatprep.subr.mxu0 0.0
    %83 = vmatpush2.msra.mxu0 0.0
    %84 = vmatprep.subr.mxu0 0.0
    %85 = vmatpush2.msra.mxu0 0.0
    %86 = vmatprep.subr.mxu0 0.0
    %87 = vmatpush2.msra.mxu0 0.0
    %88 = vmatprep.subr.mxu0 0.0
    %89 = vmatpush2.msra.mxu0 0.0
    %90 = vmatprep.subr.mxu0 0.0
    %91 = vmatpush2.msra.mxu0 0.0
    %92 = vmatprep.subr.mxu0 0.0
    %93 = vmatpush2.msra.mxu0 0.0
    %94 = vmatprep.subr.mxu0 0.0
    %95 = vmatpush2.msra.mxu0 0.0
    %96 = vmatprep.subr.mxu0 0.0
    %97 = vmatpush2.msra.mxu0 0.0
    %98 = vmatprep.subr.mxu0 0.0
    %99 = vmatpush2.msra.mxu0 0.0
    %100 = vmatprep.subr.mxu0 0.0
    %101 = vmatpush2.msra.mxu0 0.0
    %102 = vmatprep.mubr.f32.mxu0 0.0
    %103 = vmatmul.mubr.f32.gmra.mxu0 %v33
    %v104 = vpop.f32.mrf.mxu0
    %v105 = vadd.f32 %v29, %v104
    %v106 = vpop.f32.mrf.mxu0
    %107 = vmatprep.mubr.f32.mxu0 0.0
    %108 = vmatmul.mubr.f32.gmra.mxu0 %v36
    %v109 = vpop.f32.mrf.mxu0
    %v110 = vadd.f32 %v29, %v109
    %v111 = vpop.f32.mrf.mxu0
    %112 = vdwg.mxu0
    %v113 = vtanh.pop %v105
    %v114 = vtanh.pop %v110
    %v115 = vld [vmem:[%s3] sm:$0x1]
    %vm116 = vcmask 130048
    %v118 = vsel %vm116, %v115, 0
    %v121 = vsel %vm116, %v113, 0
    %123 = vmatprep.subr.mxu0 0.0
    %124 = vmatpush1.xpose.msra.mxu0 0.0
    %125 = vmatprep.subr.mxu0 0.0
    %126 = vmatpush1.xpose.msra.mxu0 0.0
    %127 = vmatprep.subr.mxu0 0.0
    %128 = vmatpush1.xpose.msra.mxu0 0.0
    %129 = vmatprep.subr.mxu0 0.0
    %130 = vmatpush1.xpose.msra.mxu0 0.0
    %131 = vmatprep.subr.mxu0 0.0
    %132 = vmatpush1.xpose.msra.mxu0 0.0
    %133 = vmatprep.subr.mxu0 0.0
    %134 = vmatpush1.xpose.msra.mxu0 0.0
    %135 = vmatprep.subr.mxu0 0.0
    %136 = vmatpush1.xpose.msra.mxu0 0.0
    %137 = vmatprep.subr.mxu0 0.0
    %138 = vmatpush1.xpose.msra.mxu0 0.0
    %139 = vmatprep.subr.mxu0 0.0
    %140 = vmatpush1.xpose.msra.mxu0 0.0
    %141 = vmatprep.subr.mxu0 0.0
    %142 = vmatpush1.xpose.msra.mxu0 0.0
    %143 = vmatprep.subr.mxu0 0.0
    %144 = vmatpush1.xpose.msra.mxu0 0.0
    %145 = vmatprep.subr.mxu0 0.0
    %146 = vmatpush1.xpose.msra.mxu0 0.0
    %147 = vmatprep.subr.mxu0 0.0
    %148 = vmatpush1.xpose.msra.mxu0 0.0
    %149 = vmatprep.subr.mxu0 0.0
    %150 = vmatpush1.xpose.msra.mxu0 0.0
    %151 = vmatprep.subr.mxu0 0.0
    %152 = vmatpush1.xpose.msra.mxu0 0.0
    %153 = vmatprep.subr.mxu0 0.0
    %154 = vmatpush1.xpose.msra.mxu0 %v121
    %155 = vmatprep.subr.mxu0 0.0
    %156 = vmatpush2.xpose.msra.mxu0 0.0
    %157 = vmatprep.subr.mxu0 0.0
    %158 = vmatpush2.xpose.msra.mxu0 0.0
    %159 = vmatprep.subr.mxu0 0.0
    %160 = vmatpush2.xpose.msra.mxu0 0.0
    %161 = vmatprep.subr.mxu0 0.0
    %162 = vmatpush2.xpose.msra.mxu0 0.0
    %163 = vmatprep.subr.mxu0 0.0
    %164 = vmatpush2.xpose.msra.mxu0 0.0
    %165 = vmatprep.subr.mxu0 0.0
    %166 = vmatpush2.xpose.msra.mxu0 0.0
    %167 = vmatprep.subr.mxu0 0.0
    %168 = vmatpush2.xpose.msra.mxu0 0.0
    %169 = vmatprep.subr.mxu0 0.0
    %170 = vmatpush2.xpose.msra.mxu0 0.0
    %171 = vmatprep.subr.mxu0 0.0
    %172 = vmatpush2.xpose.msra.mxu0 0.0
    %173 = vmatprep.subr.mxu0 0.0
    %174 = vmatpush2.xpose.msra.mxu0 0.0
    %175 = vmatprep.subr.mxu0 0.0
    %176 = vmatpush2.xpose.msra.mxu0 0.0
    %177 = vmatprep.subr.mxu0 0.0
    %178 = vmatpush2.xpose.msra.mxu0 0.0
    %179 = vmatprep.subr.mxu0 0.0
    %180 = vmatpush2.xpose.msra.mxu0 0.0
    %181 = vmatprep.subr.mxu0 0.0
    %182 = vmatpush2.xpose.msra.mxu0 0.0
    %183 = vmatprep.subr.mxu0 0.0
    %184 = vmatpush2.xpose.msra.mxu0 0.0
    %185 = vmatprep.subr.mxu0 0.0
    %186 = vmatpush2.xpose.msra.mxu0 0.0
    %187 = vmatprep.mubr.f32.mxu0 0.0
    %188 = vmatmul.mubr.f32.gmra.mxu0 %v118
    %v189 = vpop.f32.mrf.mxu0
    %v190 = vadd.f32 0.0, %v189
    %v191 = vpop.f32.mrf.mxu0
    %192 = vdwg.mxu0
    %v194 = vsel %vm116, %v114, 0
    %196 = vmatprep.subr.mxu0 0.0
    %197 = vmatpush1.xpose.msra.mxu0 0.0
    %198 = vmatprep.subr.mxu0 0.0
    %199 = vmatpush1.xpose.msra.mxu0 0.0
    %200 = vmatprep.subr.mxu0 0.0
    %201 = vmatpush1.xpose.msra.mxu0 0.0
    %202 = vmatprep.subr.mxu0 0.0
    %203 = vmatpush1.xpose.msra.mxu0 0.0
    %204 = vmatprep.subr.mxu0 0.0
    %205 = vmatpush1.xpose.msra.mxu0 0.0
    %206 = vmatprep.subr.mxu0 0.0
    %207 = vmatpush1.xpose.msra.mxu0 0.0
    %208 = vmatprep.subr.mxu0 0.0
    %209 = vmatpush1.xpose.msra.mxu0 0.0
    %210 = vmatprep.subr.mxu0 0.0
    %211 = vmatpush1.xpose.msra.mxu0 0.0
    %212 = vmatprep.subr.mxu0 0.0
    %213 = vmatpush1.xpose.msra.mxu0 0.0
    %214 = vmatprep.subr.mxu0 0.0
    %215 = vmatpush1.xpose.msra.mxu0 0.0
    %216 = vmatprep.subr.mxu0 0.0
    %217 = vmatpush1.xpose.msra.mxu0 0.0
    %218 = vmatprep.subr.mxu0 0.0
    %219 = vmatpush1.xpose.msra.mxu0 0.0
    %220 = vmatprep.subr.mxu0 0.0
    %221 = vmatpush1.xpose.msra.mxu0 0.0
    %222 = vmatprep.subr.mxu0 0.0
    %223 = vmatpush1.xpose.msra.mxu0 0.0
    %224 = vmatprep.subr.mxu0 0.0
    %225 = vmatpush1.xpose.msra.mxu0 0.0
    %226 = vmatprep.subr.mxu0 0.0
    %227 = vmatpush1.xpose.msra.mxu0 %v194
    %228 = vmatprep.subr.mxu0 0.0
    %229 = vmatpush2.xpose.msra.mxu0 0.0
    %230 = vmatprep.subr.mxu0 0.0
    %231 = vmatpush2.xpose.msra.mxu0 0.0
    %232 = vmatprep.subr.mxu0 0.0
    %233 = vmatpush2.xpose.msra.mxu0 0.0
    %234 = vmatprep.subr.mxu0 0.0
    %235 = vmatpush2.xpose.msra.mxu0 0.0
    %236 = vmatprep.subr.mxu0 0.0
    %237 = vmatpush2.xpose.msra.mxu0 0.0
    %238 = vmatprep.subr.mxu0 0.0
    %239 = vmatpush2.xpose.msra.mxu0 0.0
    %240 = vmatprep.subr.mxu0 0.0
    %241 = vmatpush2.xpose.msra.mxu0 0.0
    %242 = vmatprep.subr.mxu0 0.0
    %243 = vmatpush2.xpose.msra.mxu0 0.0
    %244 = vmatprep.subr.mxu0 0.0
    %245 = vmatpush2.xpose.msra.mxu0 0.0
    %246 = vmatprep.subr.mxu0 0.0
    %247 = vmatpush2.xpose.msra.mxu0 0.0
    %248 = vmatprep.subr.mxu0 0.0
    %249 = vmatpush2.xpose.msra.mxu0 0.0
    %250 = vmatprep.subr.mxu0 0.0
    %251 = vmatpush2.xpose.msra.mxu0 0.0
    %252 = vmatprep.subr.mxu0 0.0
    %253 = vmatpush2.xpose.msra.mxu0 0.0
    %254 = vmatprep.subr.mxu0 0.0
    %255 = vmatpush2.xpose.msra.mxu0 0.0
    %256 = vmatprep.subr.mxu0 0.0
    %257 = vmatpush2.xpose.msra.mxu0 0.0
    %258 = vmatprep.subr.mxu0 0.0
    %259 = vmatpush2.xpose.msra.mxu0 0.0
    %260 = vmatprep.mubr.f32.mxu0 0.0
    %261 = vmatmul.mubr.f32.gmra.mxu0 %v118
    %v262 = vpop.f32.mrf.mxu0
    %v263 = vadd.f32 0.0, %v262
    %v264 = vpop.f32.mrf.mxu0
    %265 = vdwg.mxu0
    %vm266 = vcmask 57344
    %v267 = vsel %vm266, %v190, -inf
    %268 = vmax.xlane.f32.xlu0 %v267
    %v269 = vpop.xlane.xlu0 %268
    %v270 = vsel %vm266, %v263, -inf
    %271 = vmax.xlane.f32.xlu0 %v270
    %v272 = vpop.xlane.xlu0 %271
    %v273 = vsub.f32 %v190, %v269
    %v274 = vsub.f32 %v263, %v272
    %v275 = vmul.f32 %v273, 1.442695
    %v276 = vpow.pop %v275
    %v277 = vmul.f32 %v274, 1.442695
    %v278 = vpow.pop %v277
    %v279 = vsel %vm266, %v276, 0.0
    %280 = vadd.xlane.f32.xlu0 %v279
    %v281 = vpop.xlane.xlu0 %280
    %v282 = vsel %vm266, %v278, 0.0
    %283 = vadd.xlane.f32.xlu0 %v282
    %v284 = vpop.xlane.xlu0 %283
    %vm285 = vcmask 64512
    %v287 = vsel %vm285, %v276, 0
    %289 = vmatprep.subr.mxu0 0.0
    %290 = vmatpush1.msra.mxu0 0.0
    %291 = vmatprep.subr.mxu0 0.0
    %292 = vmatpush1.msra.mxu0 0.0
    %293 = vmatprep.subr.mxu0 0.0
    %294 = vmatpush1.msra.mxu0 0.0
    %295 = vmatprep.subr.mxu0 0.0
    %296 = vmatpush1.msra.mxu0 0.0
    %297 = vmatprep.subr.mxu0 0.0
    %298 = vmatpush1.msra.mxu0 0.0
    %299 = vmatprep.subr.mxu0 0.0
    %300 = vmatpush1.msra.mxu0 0.0
    %301 = vmatprep.subr.mxu0 0.0
    %302 = vmatpush1.msra.mxu0 0.0
    %303 = vmatprep.subr.mxu0 0.0
    %304 = vmatpush1.msra.mxu0 0.0
    %305 = vmatprep.subr.mxu0 0.0
    %306 = vmatpush1.msra.mxu0 0.0
    %307 = vmatprep.subr.mxu0 0.0
    %308 = vmatpush1.msra.mxu0 0.0
    %309 = vmatprep.subr.mxu0 0.0
    %310 = vmatpush1.msra.mxu0 0.0
    %311 = vmatprep.subr.mxu0 0.0
    %312 = vmatpush1.msra.mxu0 0.0
    %313 = vmatprep.subr.mxu0 0.0
    %314 = vmatpush1.msra.mxu0 0.0
    %315 = vmatprep.subr.mxu0 0.0
    %316 = vmatpush1.msra.mxu0 0.0
    %317 = vmatprep.subr.mxu0 0.0
    %318 = vmatpush1.msra.mxu0 0.0
    %319 = vmatprep.subr.mxu0 0.0
    %320 = vmatpush1.msra.mxu0 %v18
    %321 = vmatprep.subr.mxu0 0.0
    %322 = vmatpush2.msra.mxu0 0.0
    %323 = vmatprep.subr.mxu0 0.0
    %324 = vmatpush2.msra.mxu0 0.0
    %325 = vmatprep.subr.mxu0 0.0
    %326 = vmatpush2.msra.mxu0 0.0
    %327 = vmatprep.subr.mxu0 0.0
    %328 = vmatpush2.msra.mxu0 0.0
    %329 = vmatprep.subr.mxu0 0.0
    %330 = vmatpush2.msra.mxu0 0.0
    %331 = vmatprep.subr.mxu0 0.0
    %332 = vmatpush2.msra.mxu0 0.0
    %333 = vmatprep.subr.mxu0 0.0
    %334 = vmatpush2.msra.mxu0 0.0
    %335 = vmatprep.subr.mxu0 0.0
    %336 = vmatpush2.msra.mxu0 0.0
    %337 = vmatprep.subr.mxu0 0.0
    %338 = vmatpush2.msra.mxu0 0.0
    %339 = vmatprep.subr.mxu0 0.0
    %340 = vmatpush2.msra.mxu0 0.0
    %341 = vmatprep.subr.mxu0 0.0
    %342 = vmatpush2.msra.mxu0 0.0
    %343 = vmatprep.subr.mxu0 0.0
    %344 = vmatpush2.msra.mxu0 0.0
    %345 = vmatprep.subr.mxu0 0.0
    %346 = vmatpush2.msra.mxu0 0.0
    %347 = vmatprep.subr.mxu0 0.0
    %348 = vmatpush2.msra.mxu0 0.0
    %349 = vmatprep.subr.mxu0 0.0
    %350 = vmatpush2.msra.mxu0 0.0
    %351 = vmatprep.subr.mxu0 0.0
    %352 = vmatpush2.msra.mxu0 0.0
    %353 = vmatprep.mubr.f32.mxu0 0.0
    %354 = vmatmul.mubr.f32.gmra.mxu0 %v287
    %v355 = vpop.f32.mrf.mxu0
    %v356 = vadd.f32 0.0, %v355
    %v357 = vpop.f32.mrf.mxu0
    %358 = vdwg.mxu0
    %v360 = vsel %vm285, %v278, 0
    %362 = vmatprep.subr.mxu0 0.0
    %363 = vmatpush1.msra.mxu0 0.0
    %364 = vmatprep.subr.mxu0 0.0
    %365 = vmatpush1.msra.mxu0 0.0
    %366 = vmatprep.subr.mxu0 0.0
    %367 = vmatpush1.msra.mxu0 0.0
    %368 = vmatprep.subr.mxu0 0.0
    %369 = vmatpush1.msra.mxu0 0.0
    %370 = vmatprep.subr.mxu0 0.0
    %371 = vmatpush1.msra.mxu0 0.0
    %372 = vmatprep.subr.mxu0 0.0
    %373 = vmatpush1.msra.mxu0 0.0
    %374 = vmatprep.subr.mxu0 0.0
    %375 = vmatpush1.msra.mxu0 0.0
    %376 = vmatprep.subr.mxu0 0.0
    %377 = vmatpush1.msra.mxu0 0.0
    %378 = vmatprep.subr.mxu0 0.0
    %379 = vmatpush1.msra.mxu0 0.0
    %380 = vmatprep.subr.mxu0 0.0
    %381 = vmatpush1.msra.mxu0 0.0
    %382 = vmatprep.subr.mxu0 0.0
    %383 = vmatpush1.msra.mxu0 0.0
    %384 = vmatprep.subr.mxu0 0.0
    %385 = vmatpush1.msra.mxu0 0.0
    %386 = vmatprep.subr.mxu0 0.0
    %387 = vmatpush1.msra.mxu0 0.0
    %388 = vmatprep.subr.mxu0 0.0
    %389 = vmatpush1.msra.mxu0 0.0
    %390 = vmatprep.subr.mxu0 0.0
    %391 = vmatpush1.msra.mxu0 0.0
    %392 = vmatprep.subr.mxu0 0.0
    %393 = vmatpush1.msra.mxu0 %v19
    %394 = vmatprep.subr.mxu0 0.0
    %395 = vmatpush2.msra.mxu0 0.0
    %396 = vmatprep.subr.mxu0 0.0
    %397 = vmatpush2.msra.mxu0 0.0
    %398 = vmatprep.subr.mxu0 0.0
    %399 = vmatpush2.msra.mxu0 0.0
    %400 = vmatprep.subr.mxu0 0.0
    %401 = vmatpush2.msra.mxu0 0.0
    %402 = vmatprep.subr.mxu0 0.0
    %403 = vmatpush2.msra.mxu0 0.0
    %404 = vmatprep.subr.mxu0 0.0
    %405 = vmatpush2.msra.mxu0 0.0
    %406 = vmatprep.subr.mxu0 0.0
    %407 = vmatpush2.msra.mxu0 0.0
    %408 = vmatprep.subr.mxu0 0.0
    %409 = vmatpush2.msra.mxu0 0.0
    %410 = vmatprep.subr.mxu0 0.0
    %411 = vmatpush2.msra.mxu0 0.0
    %412 = vmatprep.subr.mxu0 0.0
    %413 = vmatpush2.msra.mxu0 0.0
    %414 = vmatprep.subr.mxu0 0.0
    %415 = vmatpush2.msra.mxu0 0.0
    %416 = vmatprep.subr.mxu0 0.0
    %417 = vmatpush2.msra.mxu0 0.0
    %418 = vmatprep.subr.mxu0 0.0
    %419 = vmatpush2.msra.mxu0 0.0
    %420 = vmatprep.subr.mxu0 0.0
    %421 = vmatpush2.msra.mxu0 0.0
    %422 = vmatprep.subr.mxu0 0.0
    %423 = vmatpush2.msra.mxu0 0.0
    %424 = vmatprep.subr.mxu0 0.0
    %425 = vmatpush2.msra.mxu0 0.0
    %426 = vmatprep.mubr.f32.mxu0 0.0
    %427 = vmatmul.mubr.f32.gmra.mxu0 %v360
    %v428 = vpop.f32.mrf.mxu0
    %v429 = vadd.f32 0.0, %v428
    %v430 = vpop.f32.mrf.mxu0
    %431 = vdwg.mxu0
    %v432 = vrcp.pop %v281
    %v433 = vrcp.pop %v284
    %v434 = vmul.f32 %v356, %v432
    %v435 = vmul.f32 %v429, %v433
    %v438 = vrot.slane %v435, 7
    %vm439 = vcmask 1041409
    %v440 = vsel %vm439, %v438, %v434
    %vm442 = vcmask 254976
    %443 = vst.msk [vmem:[#allocation2] sm:$0x3] %vm442, %v440
    // Predicated region
    $region18: #{tpu_custom_call.1} parent=1 // pred_check
      _
    $region19: #{tpu_custom_call.1} parent=1 // pred_check_branch
      %445 = sbr.rel (0) target = $region21
    $region20: #{tpu_custom_call.1} parent=1 // pred_region
      %s447 = ssub.s32 32, 32
      %448 = vsyncadd [#allocation3], %s447
      %s450 = sshll.u32 [#allocation2], 4
      %s451 = int_to_ptr.vmem [resolvable:$true] %s450
      %453 = dma.vmem_to_hbm [thread:$0]  %s451, 32, %s4, [#allocation3]
    $region21: #{tpu_custom_call.1} parent=1 // pred_fallthru
      _
    // Predicated region
    $region22: #{tpu_custom_call.1} parent=1 // pred_check
      _
    $region23: #{tpu_custom_call.1} parent=1 // pred_check_branch
      %455 = sbr.rel (0) target = $region25
    $region24: #{tpu_custom_call.1} parent=1 // pred_region
      %456 = dma.done [#allocation3], 32
    $region25: #{tpu_custom_call.1} parent=1 // pred_fallthru
      _
    %457 = vsyncpa [#allocation3], 1

</llo_original>
